<compile_context>
chip_gen: v7x
topology: tpu7x:2x2x1
jax: 0.10.0
libtpu: 0.0.40
codegen_flags: <defaults>
</compile_context>

<pallas_src>
import functools

import jax
import jax.numpy as jnp
from jax import lax
from jax.experimental import pallas as pl
from jax.experimental.pallas import tpu as pltpu

FOCAL_ALPHA = 0.75
FOCAL_GAMMA = 2          # fixed gamma == 2 -> implemented as (1-v)*(1-v)
LANES = 128
SUBLANES = 8
NCORES = 2               # split the reduction across (up to) 2 TensorCores (v7x)


def _focal_sums_kernel(x_ref, t_ref, fw_acc_ref, bce_acc_ref, *,
                       block_rows, total_rows, steps_per_core, mask_tail):
    c = pl.program_id(0)                 # core / partial-sum slot
    s = pl.program_id(1)                 # reduction step within this core
    i = c * steps_per_core + s           # logical (unclamped) row-block index

    @pl.when(s == 0)
    def _():
        fw_acc_ref[...] = jnp.zeros_like(fw_acc_ref)
        bce_acc_ref[...] = jnp.zeros_like(bce_acc_ref)

    x = x_ref[...].astype(jnp.float32)
    t = t_ref[...].astype(jnp.float32)

    is_one = t == 1.0
    # v = probability assigned to the true class; fuses the two BCE logs into one.
    v = jnp.where(is_one, x, 1.0 - x)

    if mask_tail:
        # Rows past the logical end of the data (partial last block, or duplicated
        # clamped blocks from the 2-core split) are forced to v == 1, which makes
        # their contribution exactly zero (fw = alpha*(1-1)^2 = 0, bce = -log 1 = 0)
        # and is NaN-safe w.r.t. whatever the out-of-bounds buffer contains.
        row_ids = lax.broadcasted_iota(jnp.int32, (block_rows, LANES), 0)
        valid = (i * block_rows + row_ids) < total_rows
        v = jnp.where(valid, v, 1.0)

    alpha = jnp.where(is_one, FOCAL_ALPHA, 1.0 - FOCAL_ALPHA)
    one_minus_v = 1.0 - v
    fw = alpha * one_minus_v * one_minus_v
    # F.binary_cross_entropy clamps the log terms at -100.
    bce = -jnp.maximum(jnp.log(v), -100.0)

    # Fold the (block_rows, 128) tile into the resident (8, 128) accumulators:
    # sublane-tile-aligned reshape + VPU adds, no cross-lane reduce per step.
    fw_acc_ref[...] += jnp.sum(fw.reshape(-1, SUBLANES, LANES), axis=0)
    bce_acc_ref[...] += jnp.sum(bce.reshape(-1, SUBLANES, LANES), axis=0)


@functools.partial(jax.jit, static_argnames=("block_rows",))
def focal_loss(inputs, targets, block_rows=2048):
    """inputs: probabilities in (0,1); targets in {0,1}. Any shape (NCHW here)."""
    n = inputs.size
    # Round requested block height to a sublane multiple.
    block_rows = max(SUBLANES, ((block_rows + SUBLANES - 1) // SUBLANES) * SUBLANES)

    x = inputs.reshape(-1)
    t = targets.reshape(-1)

    # Pad (only if needed) to a whole number of (8, 128) sublane tiles.
    # Pad values x=1, t=1 contribute exactly zero to both sums -> no mask array.
    chunk = SUBLANES * LANES
    n_pad = ((n + chunk - 1) // chunk) * chunk
    if n_pad != n:
        x = jnp.pad(x, (0, n_pad - n), constant_values=1)
        t = jnp.pad(t, (0, n_pad - n), constant_values=1)

    rows = n_pad // LANES                       # multiple of 8
    block_rows = min(block_rows, rows)          # both multiples of 8
    x2 = x.reshape(rows, LANES)                 # layout-preserving, no copy
    t2 = t.reshape(rows, LANES)

    g_total = (rows + block_rows - 1) // block_rows
    ncores = NCORES if g_total >= NCORES else 1
    steps_per_core = (g_total + ncores - 1) // ncores
    mask_tail = (ncores * steps_per_core * block_rows) != rows

    def in_map(c, s):
        # Clamp so duplicated trailing block indices stay in-bounds; those rows
        # are zeroed inside the kernel via the logical (unclamped) index.
        return (jnp.minimum(c * steps_per_core + s, g_total - 1), 0)

    blk = pl.BlockSpec((block_rows, LANES), in_map)
    acc_spec = pl.BlockSpec((SUBLANES, LANES), lambda c, s: (c, 0))

    kernel = functools.partial(
        _focal_sums_kernel,
        block_rows=block_rows,
        total_rows=rows,
        steps_per_core=steps_per_core,
        mask_tail=mask_tail,
    )

    # 2 inputs double-buffered + elementwise temporaries; keep well under 64 MiB (v7x).
    tile_bytes = block_rows * LANES * 4
    vmem_limit = int(min(96 * 2**20, max(32 * 2**20, 16 * tile_bytes)))

    fw_parts, bce_parts = pl.pallas_call(
        kernel,
        out_shape=(
            jax.ShapeDtypeStruct((ncores * SUBLANES, LANES), jnp.float32),
            jax.ShapeDtypeStruct((ncores * SUBLANES, LANES), jnp.float32),
        ),
        grid_spec=pltpu.PrefetchScalarGridSpec(
            num_scalar_prefetch=0,
            grid=(ncores, steps_per_core),
            in_specs=[blk, blk],
            out_specs=(acc_spec, acc_spec),
        ),
        compiler_params=pltpu.CompilerParams(
            dimension_semantics=("parallel", "arbitrary"),
            vmem_limit_bytes=vmem_limit,
        ),
    )(x2, t2)

    n_f = jnp.float32(n)
    bce_mean = jnp.sum(bce_parts) / n_f
    fw_mean = jnp.sum(fw_parts) / n_f
    return fw_mean * bce_mean   # mean(fw * scalar_bce) == mean(fw) * bce_mean


def _reference(inputs, targets):
    """Pure-JAX mirror of the PyTorch module (two-log BCE form)."""
    x = inputs.astype(jnp.float32)
    t = targets.astype(jnp.float32)
    is_one = t == 1.0
    alpha = jnp.where(is_one, FOCAL_ALPHA, 1.0 - FOCAL_ALPHA)
    fw = alpha * jnp.where(is_one, 1.0 - x, x) ** FOCAL_GAMMA
    bce = jnp.mean(
        -(t * jnp.maximum(jnp.log(x), -100.0)
          + (1.0 - t) * jnp.maximum(jnp.log(1.0 - x), -100.0))
    )
    return jnp.mean(fw * bce)


if __name__ == "__main__":
    key = jax.random.PRNGKey(0)
    k1, k2 = jax.random.split(key)
    # inputs are probabilities (binary_cross_entropy expects p in (0,1))
    inputs = jax.nn.sigmoid(jax.random.normal(k1, (2, 4, 16, 16), jnp.float32))
    targets = (jax.random.uniform(k2, (2, 4, 16, 16)) > 0.5).astype(jnp.float32)

    out = focal_loss(inputs, targets)
    jax.block_until_ready(out)

    ref = _reference(inputs, targets)
    assert jnp.allclose(out, ref, rtol=1e-5, atol=1e-6), (out, ref)
    print("KERNEL_OK")
</pallas_src>

<mosaic_0001>
module attributes {stable_mosaic.version = 11 : i64} {
  func.func @_focal_sums_kernel(%arg0: i32, %arg1: i32, %arg2: memref<16x128xf32, #tpu.memory_space<vmem>>, %arg3: memref<16x128xf32, #tpu.memory_space<vmem>>, %arg4: memref<8x128xf32, #tpu.memory_space<vmem>>, %arg5: memref<8x128xf32, #tpu.memory_space<vmem>>) attributes {dimension_semantics = [#tpu.dimension_semantics<parallel>, #tpu.dimension_semantics<arbitrary>], iteration_bounds = array<i64: 1, 1>, scalar_prefetch = 0 : i64, scratch_operands = 0 : i64, tpu.core_type = #tpu.core_type<tc>, window_params = [{transform_indices = @transform_0, window_bounds = array<i64: 16, 128>}, {transform_indices = @transform_1, window_bounds = array<i64: 16, 128>}, {transform_indices = @transform_2, window_bounds = array<i64: 8, 128>}, {transform_indices = @transform_3, window_bounds = array<i64: 8, 128>}]} {
    %c0_i32 = arith.constant 0 : i32
    %0 = arith.cmpi eq, %arg1, %c0_i32 : i32
    %1 = arith.extui %0 : i1 to i32
    %c0_i32_0 = arith.constant 0 : i32
    %2 = arith.cmpi ne, %1, %c0_i32_0 : i32
    scf.if %2 {
      %cst_20 = arith.constant 0.000000e+00 : f32
      %32 = vector.broadcast %cst_20 : f32 to vector<8x128xf32>
      %c0_21 = arith.constant 0 : index
      %c0_22 = arith.constant 0 : index
      %33 = vector.load %arg4[%c0_21, %c0_22] : memref<8x128xf32, #tpu.memory_space<vmem>>, vector<8x128xf32>
      tpu.vector_store %arg4[%c0_21, %c0_22], %32 {strides = array<i32>} : memref<8x128xf32, #tpu.memory_space<vmem>>, vector<8x128xf32>,
      %cst_23 = arith.constant 0.000000e+00 : f32
      %34 = vector.broadcast %cst_23 : f32 to vector<8x128xf32>
      %c0_24 = arith.constant 0 : index
      %c0_25 = arith.constant 0 : index
      %35 = vector.load %arg5[%c0_24, %c0_25] : memref<8x128xf32, #tpu.memory_space<vmem>>, vector<8x128xf32>
      tpu.vector_store %arg5[%c0_24, %c0_25], %34 {strides = array<i32>} : memref<8x128xf32, #tpu.memory_space<vmem>>, vector<8x128xf32>,
    } else {
    }
    %c0 = arith.constant 0 : index
    %c0_1 = arith.constant 0 : index
    %3 = vector.load %arg2[%c0, %c0_1] : memref<16x128xf32, #tpu.memory_space<vmem>>, vector<16x128xf32>
    %c0_2 = arith.constant 0 : index
    %c0_3 = arith.constant 0 : index
    %4 = vector.load %arg3[%c0_2, %c0_3] : memref<16x128xf32, #tpu.memory_space<vmem>>, vector<16x128xf32>
    %cst = arith.constant 1.000000e+00 : f32
    %5 = vector.broadcast %cst : f32 to vector<16x128xf32>
    %6 = arith.cmpf oeq, %4, %5 : vector<16x128xf32>
    %cst_4 = arith.constant 1.000000e+00 : f32
    %7 = vector.broadcast %cst_4 : f32 to vector<16x128xf32>
    %8 = arith.subf %7, %3 : vector<16x128xf32>
    %9 = arith.select %6, %3, %8 : vector<16x128xi1>, vector<16x128xf32>
    %cst_5 = arith.constant 7.500000e-01 : f32
    %cst_6 = arith.constant 2.500000e-01 : f32
    %10 = vector.broadcast %cst_5 : f32 to vector<16x128xf32>
    %11 = vector.broadcast %cst_6 : f32 to vector<16x128xf32>
    %12 = arith.select %6, %10, %11 : vector<16x128xi1>, vector<16x128xf32>
    %cst_7 = arith.constant 1.000000e+00 : f32
    %13 = vector.broadcast %cst_7 : f32 to vector<16x128xf32>
    %14 = arith.subf %13, %9 : vector<16x128xf32>
    %15 = arith.mulf %12, %14 : vector<16x128xf32>
    %16 = arith.mulf %15, %14 : vector<16x128xf32>
    %17 = math.log %9 : vector<16x128xf32>
    %cst_8 = arith.constant -1.000000e+02 : f32
    %18 = vector.broadcast %cst_8 : f32 to vector<16x128xf32>
    %19 = arith.maximumf %17, %18 : vector<16x128xf32>
    %cst_9 = arith.constant 0.000000e+00 : f32
    %20 = vector.broadcast %cst_9 : f32 to vector<16x128xf32>
    %21 = arith.subf %20, %19 : vector<16x128xf32>
    %c0_10 = arith.constant 0 : index
    %c0_11 = arith.constant 0 : index
    %22 = vector.load %arg4[%c0_10, %c0_11] : memref<8x128xf32, #tpu.memory_space<vmem>>, vector<8x128xf32>
    %23 = vector.shape_cast %16 : vector<16x128xf32> to vector<2x8x128xf32>
    %cst_12 = arith.constant dense<0.000000e+00> : vector<8x128xf32>
    %24 = vector.multi_reduction <add>, %23, %cst_12 [0] : vector<2x8x128xf32> to vector<8x128xf32>
    %25 = arith.addf %22, %24 : vector<8x128xf32>
    %c0_13 = arith.constant 0 : index
    %c0_14 = arith.constant 0 : index
    %26 = vector.load %arg4[%c0_13, %c0_14] : memref<8x128xf32, #tpu.memory_space<vmem>>, vector<8x128xf32>
    tpu.vector_store %arg4[%c0_13, %c0_14], %25 {strides = array<i32>} : memref<8x128xf32, #tpu.memory_space<vmem>>, vector<8x128xf32>,
    %c0_15 = arith.constant 0 : index
    %c0_16 = arith.constant 0 : index
    %27 = vector.load %arg5[%c0_15, %c0_16] : memref<8x128xf32, #tpu.memory_space<vmem>>, vector<8x128xf32>
    %28 = vector.shape_cast %21 : vector<16x128xf32> to vector<2x8x128xf32>
    %cst_17 = arith.constant dense<0.000000e+00> : vector<8x128xf32>
    %29 = vector.multi_reduction <add>, %28, %cst_17 [0] : vector<2x8x128xf32> to vector<8x128xf32>
    %30 = arith.addf %27, %29 : vector<8x128xf32>
    %c0_18 = arith.constant 0 : index
    %c0_19 = arith.constant 0 : index
    %31 = vector.load %arg5[%c0_18, %c0_19] : memref<8x128xf32, #tpu.memory_space<vmem>>, vector<8x128xf32>
    tpu.vector_store %arg5[%c0_18, %c0_19], %30 {strides = array<i32>} : memref<8x128xf32, #tpu.memory_space<vmem>>, vector<8x128xf32>,
    return
  }
  func.func @transform_0(%arg0: i32, %arg1: i32) -> (i32, i32) {
    %c1_i32 = arith.constant 1 : i32
    %0 = arith.muli %arg0, %c1_i32 : i32
    %1 = arith.addi %0, %arg1 : i32
    %c0_i32 = arith.constant 0 : i32
    %2 = arith.minsi %1, %c0_i32 : i32
    %c0_i32_0 = arith.constant 0 : i32
    %c0_i32_1 = arith.constant 0 : i32
    return %2, %c0_i32_0 : i32, i32
  }
  func.func @transform_1(%arg0: i32, %arg1: i32) -> (i32, i32) {
    %c1_i32 = arith.constant 1 : i32
    %0 = arith.muli %arg0, %c1_i32 : i32
    %1 = arith.addi %0, %arg1 : i32
    %c0_i32 = arith.constant 0 : i32
    %2 = arith.minsi %1, %c0_i32 : i32
    %c0_i32_0 = arith.constant 0 : i32
    %c0_i32_1 = arith.constant 0 : i32
    return %2, %c0_i32_0 : i32, i32
  }
  func.func @transform_2(%arg0: i32, %arg1: i32) -> (i32, i32) {
    %c0_i32 = arith.constant 0 : i32
    %c0_i32_0 = arith.constant 0 : i32
    return %arg0, %c0_i32 : i32, i32
  }
  func.func @transform_3(%arg0: i32, %arg1: i32) -> (i32, i32) {
    %c0_i32 = arith.constant 0 : i32
    %c0_i32_0 = arith.constant 0 : i32
    return %arg0, %c0_i32 : i32, i32
  }
}

</mosaic_0001>

<llo_original>
// kernel: focal_loss.1
$region0: #{focal_loss.1}
  #allocation0 [shape = 'u32[]', space=smem, size = 0x4, offset = 0x4, fixed_abs, tag = 'smem constant byte address 0x4 - core index']
  #allocation1 [shape = 'u32[144,128]{1,0:T(1,128)}', space=vmem, size = 0x12000, scoped, tag = 'internal scratch']
  %s0 = inlined_call_operand.vmem [shape: f32[16,128], index: 0, kind: input, shape index: {}]
  %s1 = inlined_call_operand.vmem [shape: f32[16,128], index: 1, kind: input, shape index: {}]
  %s2 = inlined_call_operand.vmem [shape: f32[8,128], index: 2, kind: output, shape index: {0}]
  %s3 = inlined_call_operand.vmem [shape: f32[8,128], index: 3, kind: output, shape index: {1}]
  %4 = xla_tuple %s2, %s3
  %s5 = sld [smem:[#allocation0]]
  $region30: #{focal_loss.1} parent=0
    _
  %s7 = ssub.s32 1, %s5
  %s8 = scalar_select 0, %s7, %s5
  // Predicated region
  $region2: #{focal_loss.1} parent=0 // pred_check
    _
  $region3: #{focal_loss.1} parent=0 // pred_check_branch
    %10 = sbr.rel (0) target = $region5
  $region4: #{focal_loss.1} parent=0 // pred_region
    %s11 = sadd.s32 0, 0
    %p12 = scmp.lt.s32.totalorder %s11, 0
    %s13 = scalar_select %p12, %s11, 0
    %s14 = smul.u32 2, %s13
    %p15 = scmp.lt.s32.totalorder %s14, 1
    %s16 = scalar_select %p15, %s14, 1
    %s17 = smul.addr %s16, 8
    %s18 = scalar_lea.vmem %s0, %s17
    %s19 = sadd.s32 0, 0
    %p20 = scmp.lt.s32.totalorder %s19, 0
    %s21 = scalar_select %p20, %s19, 0
    %s22 = smul.u32 2, %s21
  $region5: #{focal_loss.1} parent=0 // pred_fallthru
    _
  // Predicated region
  $region6: #{focal_loss.1} parent=0 // pred_check
    _
  $region7: #{focal_loss.1} parent=0 // pred_check_branch
    %24 = sbr.rel (0) target = $region9
  $region8: #{focal_loss.1} parent=0 // pred_region
    %s25 = sadd.s32 0, 0
    %p26 = scmp.lt.s32.totalorder %s25, 0
    %s27 = scalar_select %p26, %s25, 0
    %s28 = smul.u32 2, %s27
    %p29 = scmp.lt.s32.totalorder %s28, 1
    %s30 = scalar_select %p29, %s28, 1
    %s31 = smul.addr %s30, 8
    %s32 = scalar_lea.vmem %s1, %s31
    %s33 = sadd.s32 0, 0
    %p34 = scmp.lt.s32.totalorder %s33, 0
    %s35 = scalar_select %p34, %s33, 0
    %s36 = smul.u32 2, %s35
  $region9: #{focal_loss.1} parent=0 // pred_fallthru
    _
  %s37 = sadd.s32 0, 0
  %p38 = scmp.lt.s32.totalorder %s37, 0
  %s39 = scalar_select %p38, %s37, 0
  %s40 = smul.u32 2, %s39
  %p41 = scmp.lt.s32.totalorder %s40, 1
  %s42 = scalar_select %p41, %s40, 1
  %s43 = smul.addr %s42, 8
  %s44 = scalar_lea.vmem %s0, %s43
  %s45 = sadd.s32 0, 0
  %p46 = scmp.lt.s32.totalorder %s45, 0
  %s47 = scalar_select %p46, %s45, 0
  %s48 = smul.u32 2, %s47
  %p49 = scmp.lt.s32.totalorder %s48, 1
  %s50 = scalar_select %p49, %s48, 1
  %s51 = smul.addr %s50, 8
  %s52 = scalar_lea.vmem %s1, %s51
  %s53 = sadd.s32 0, 0
  %p54 = scmp.lt.s32.totalorder %s53, 0
  %s55 = scalar_select %p54, %s53, 0
  %s56 = smul.u32 2, %s55
  %p57 = scmp.lt.s32.totalorder %s56, 1
  %s58 = scalar_select %p57, %s56, 1
  %s59 = smul.addr %s58, 8
  %s60 = scalar_lea.vmem %s0, %s59
  %s61 = sadd.s32 0, 0
  %p62 = scmp.lt.s32.totalorder %s61, 0
  %s63 = scalar_select %p62, %s61, 0
  %s64 = smul.u32 2, %s63
  %s65 = sadd.s32 0, 0
  %p66 = scmp.lt.s32.totalorder %s65, 0
  %s67 = scalar_select %p66, %s65, 0
  %s68 = smul.u32 2, %s67
  %p69 = scmp.lt.s32.totalorder %s68, 1
  %s70 = scalar_select %p69, %s68, 1
  %s71 = smul.addr %s70, 8
  %s72 = scalar_lea.vmem %s1, %s71
  %s73 = sadd.s32 0, 0
  %p74 = scmp.lt.s32.totalorder %s73, 0
  %s75 = scalar_select %p74, %s73, 0
  %s76 = smul.u32 2, %s75
  %p77 = scmp.eq.s32.totalorder 0, 0
  // Predicated region
  $region10: #{focal_loss.1} parent=0 // pred_check
    %p78 = pneg %p77
  $region11: #{focal_loss.1} parent=0 // pred_check_branch
    %80 = sbr.rel (%p78) target = $region13
  $region12: #{focal_loss.1} parent=0 // pred_region
    %81 = vst [vmem:[%s2] sm:$0xff] 0.0
    %82 = vst [vmem:[%s3] sm:$0xff] 0.0
  $region13: #{focal_loss.1} parent=0 // pred_fallthru
    _
  %v83 = vld [vmem:[%s60] sm:$0xff]
  %v84 = vld [vmem:[%s60 + $0x8] sm:$0xff]
  %v85 = vld [vmem:[%s72] sm:$0xff]
  %v86 = vld [vmem:[%s72 + $0x8] sm:$0xff]
  %vm87 = vcmp.eq.f32.partialorder %v85, 1.0
  %vm88 = vcmp.eq.f32.partialorder %v86, 1.0
  %v89 = vsub.f32 1.0, %v83
  %v90 = vsub.f32 1.0, %v84
  %v91 = vsel %vm87, %v83, %v89
  %v92 = vsel %vm88, %v84, %v90
  %v93 = vsel %vm87, 0.75, 0.25
  %v94 = vsel %vm88, 0.75, 0.25
  %v95 = vsub.f32 1.0, %v91
  %v96 = vsub.f32 1.0, %v92
  %v97 = vmul.f32 %v93, %v95
  %v98 = vmul.f32 %v94, %v96
  %v99 = vmul.f32 %v97, %v95
  %v100 = vmul.f32 %v98, %v96
  %v101 = vlog2.pop %v91
  %v102 = vmul.f32 %v101, 0.6931472
  %v103 = vlog2.pop %v92
  %v104 = vmul.f32 %v103, 0.6931472
  %v105 = vmax.f32 %v102, -100.0
  %v106 = vmax.f32 %v104, -100.0
  %v107 = vsub.f32 0.0, %v105
  %v108 = vsub.f32 0.0, %v106
  %v109 = vld [vmem:[%s2] sm:$0xff]
  %v110 = vadd.f32 %v99, %v100
  %v111 = vadd.f32 %v109, %v110
  %112 = vst [vmem:[%s2] sm:$0xff] %v111
  %v113 = vld [vmem:[%s3] sm:$0xff]
  %v114 = vadd.f32 %v107, %v108
  %v115 = vadd.f32 %v113, %v114
  %116 = vst [vmem:[%s3] sm:$0xff] %v115
  // Predicated region
  $region14: #{focal_loss.1} parent=0 // pred_check
    _
  $region15: #{focal_loss.1} parent=0 // pred_check_branch
    %118 = sbr.rel (0) target = $region17
  $region16: #{focal_loss.1} parent=0 // pred_region
    _
  $region17: #{focal_loss.1} parent=0 // pred_fallthru
    _
  // Predicated region
  $region18: #{focal_loss.1} parent=0 // pred_check
    _
  $region19: #{focal_loss.1} parent=0 // pred_check_branch
    %120 = sbr.rel (0) target = $region21
  $region20: #{focal_loss.1} parent=0 // pred_region
    _
  $region21: #{focal_loss.1} parent=0 // pred_fallthru
    _
  // Predicated region
  $region22: #{focal_loss.1} parent=0 // pred_check
    _
  $region23: #{focal_loss.1} parent=0 // pred_check_branch
    %122 = sbr.rel (0) target = $region25
  $region24: #{focal_loss.1} parent=0 // pred_region
    _
  $region25: #{focal_loss.1} parent=0 // pred_fallthru
    _
  // Predicated region
  $region26: #{focal_loss.1} parent=0 // pred_check
    _
  $region27: #{focal_loss.1} parent=0 // pred_check_branch
    %124 = sbr.rel (0) target = $region29
  $region28: #{focal_loss.1} parent=0 // pred_region
    _
  $region29: #{focal_loss.1} parent=0 // pred_fallthru
    _

</llo_original>
